<compile_context>
chip_gen: v7x
topology: tpu7x:2x2x1
jax: 0.10.0
libtpu: 0.0.40
codegen_flags: <defaults>
</compile_context>

<pallas_src>
import functools
import math

import jax
import jax.numpy as jnp
from jax import lax
from jax.experimental import pallas as pl
from jax.experimental.pallas import tpu as pltpu

NEG_SLOPE = 0.2  # LeakyReLU(0.2)


# ----------------------------------------------------------------------------
# Shared per-tile compute (both kernel variants call this)
# ----------------------------------------------------------------------------
def _conv_core(get_x, tile_start, w1_ref, b1_ref, w2_ref, bc_ref, wp_ref, *,
               L, TL, P, K, identity_res, out_dtype):
    """Compute one (C_out, TL) output tile.

    get_x(off, width): bf16 (C_in, width) slice of the x window; column `off`
    corresponds to absolute sequence position `tile_start - 2*P + off`
    (zero outside [0, L) thanks to the padded input).
    """
    Wy = TL + 2 * P  # conv1 output incl. the halo conv2 needs

    # ---- conv1: K accumulating MXU dots (no materialized im2col) ------------
    acc1 = jnp.dot(w1_ref[0], get_x(0, Wy), preferred_element_type=jnp.float32)
    for k in range(1, K):
        acc1 += jnp.dot(w1_ref[k], get_x(k, Wy),
                        preferred_element_type=jnp.float32)
    y1 = acc1 + b1_ref[...]
    y1 = jnp.maximum(y1, NEG_SLOPE * y1)            # LeakyReLU(0.2), f32
    y1b = y1.astype(jnp.bfloat16)

    # conv2 must see *zero* padding outside [0, L): zero the halo columns that
    # fall off the sequence ends (they hold conv1-of-padding otherwise).
    # Applied on the bf16 copy; interior tiles pay one cheap select.
    pos = tile_start - P + lax.broadcasted_iota(jnp.int32, (1, Wy), 1)
    y1b = jnp.where((pos >= 0) & (pos < L), y1b, jnp.zeros_like(y1b))

    # ---- conv2: K accumulating dots, f32 accumulation ------------------------
    acc = jnp.dot(w2_ref[0], y1b[:, 0:TL], preferred_element_type=jnp.float32)
    for k in range(1, K):
        acc += jnp.dot(w2_ref[k], y1b[:, k:k + TL],
                       preferred_element_type=jnp.float32)

    # ---- residual ------------------------------------------------------------
    x_body = get_x(2 * P, TL)                       # (C_in, TL) bf16
    if identity_res:
        acc += x_body.astype(jnp.float32)           # exact add, no eye-matmul
    else:
        acc += jnp.dot(wp_ref[...], x_body, preferred_element_type=jnp.float32)

    out = acc + bc_ref[...]                         # b2 (+ bp) folded together
    return jnp.maximum(out, NEG_SLOPE * out).astype(out_dtype)


# ----------------------------------------------------------------------------
# Kernel variant 1: single L tile -> fully auto-pipelined (x via BlockSpec)
# ----------------------------------------------------------------------------
def _make_single_tile_kernel(*, L, P, K, identity_res, out_dtype):
    def kernel(x_ref, w1_ref, b1_ref, w2_ref, bc_ref, *rest):
        if identity_res:
            (o_ref,) = rest
            wp_ref = None
        else:
            (wp_ref, o_ref) = rest

        def get_x(off, width):
            return x_ref[0, :, pl.ds(off, width)]   # static slice, no full load

        o_ref[0] = _conv_core(get_x, 0, w1_ref, b1_ref, w2_ref, bc_ref, wp_ref,
                              L=L, TL=L, P=P, K=K,
                              identity_res=identity_res, out_dtype=out_dtype)
    return kernel


# ----------------------------------------------------------------------------
# Kernel variant 2: tiled sequence -> manual halo DMA, double-buffered window
# ----------------------------------------------------------------------------
def _make_multi_tile_kernel(*, L, TL, P, K, identity_res, out_dtype):
    W = TL + 4 * P                                  # x window incl. 2P halo/side

    def kernel(x_hbm, w1_ref, b1_ref, w2_ref, bc_ref, *rest):
        if identity_res:
            (o_ref, xbuf, sem) = rest
            wp_ref = None
        else:
            (wp_ref, o_ref, xbuf, sem) = rest

        n = pl.program_id(0)
        j = pl.program_id(1)
        n_lt = pl.num_programs(1)

        def window_copy(jj, slot_):
            start = pl.multiple_of(jj * TL, 128)    # TL % 128 == 0 (asserted)
            return pltpu.make_async_copy(
                x_hbm.at[n, :, pl.ds(start, W)], xbuf.at[slot_], sem.at[slot_])

        # Prime the double buffer on the first L-tile of each sample.
        @pl.when(j == 0)
        def _():
            window_copy(0, 0).start()

        slot = j & 1
        window_copy(j, slot).wait()

        # Prefetch the next tile of the *same* sample so its HBM latency hides
        # under this tile's matmuls (never crosses the batch axis, so the batch
        # grid dim stays "parallel"-shardable).
        @pl.when(j + 1 < n_lt)
        def _():
            window_copy(j + 1, (j + 1) & 1).start()

        def get_x(off, width):
            # Slice straight out of the scratch window (no full-window load).
            return xbuf[slot, :, pl.ds(off, width)]

        o_ref[0] = _conv_core(get_x, j * TL, w1_ref, b1_ref, w2_ref, bc_ref,
                              wp_ref, L=L, TL=TL, P=P, K=K,
                              identity_res=identity_res, out_dtype=out_dtype)
    return kernel


# ----------------------------------------------------------------------------
# Generation-aware VMEM budgeting helpers
# ----------------------------------------------------------------------------
def _vmem_capacity_bytes():
    try:
        cap = getattr(pltpu.get_tpu_info(), "vmem_capacity_bytes", None)
        if cap:
            return int(cap)
    except Exception:
        pass
    return 64 * 1024 * 1024        # conservative: v7x per-TC physical VMEM


def _auto_seq_tile(L, C_in, C_out, K, P, out_dtype, budget):
    out_b = jnp.dtype(out_dtype).itemsize

    def est(tl):
        w, wy = tl + 4 * P, tl + 2 * P
        xwin = 2 * C_in * w * 2                       # double-buffered bf16 window
        outblk = 2 * C_out * tl * out_b               # output double-buffer
        wts = 2 * 2 * K * C_out * (C_in + C_out) + 2 * 2 * C_out * C_in
        tmp = C_out * wy * 4 + C_out * wy * 2 + C_out * tl * 4   # y1 f32 + bf16 + acc
        return xwin + outblk + wts + tmp

    cands = sorted({t for t in (L, 16384, 8192, 4096, 2048, 1024, 512, 256, 128)
                    if t <= L and L % t == 0 and (t == L or t % 128 == 0)},
                   reverse=True)
    for t in cands:
        if est(t) <= budget:
            return t
    return cands[-1] if cands else L


# ----------------------------------------------------------------------------
# JAX wrapper (padding, weight repacking, BlockSpecs, grid)
# ----------------------------------------------------------------------------
def resblock_forward(x, w1, b1, w2, b2, wp=None, bp=None, *,
                     kernel_size, stride, padding, seq_tile=None,
                     out_dtype=jnp.bfloat16):
    assert stride == 1 and padding == (kernel_size - 1) // 2, (
        "residual add requires stride=1 / 'same' padding")
    N, C_in, L = x.shape
    C_out = w1.shape[0]
    K, P = kernel_size, padding
    identity_res = wp is None
    if identity_res:
        assert C_in == C_out

    # VMEM budget derived from the actual part (v7x 64 MiB vs v5e/v6e 128 MiB).
    vmem_cap = _vmem_capacity_bytes()
    vmem_limit = (vmem_cap * 3) // 4

    if seq_tile is None:
        TL = _auto_seq_tile(L, C_in, C_out, K, P, out_dtype, budget=vmem_limit // 2)
    else:
        TL = min(seq_tile, L)
    assert L % TL == 0, "sequence length must be divisible by the L tile"
    n_lt = L // TL
    if n_lt > 1:
        assert TL % 128 == 0, "multi-tile path needs a 128-aligned L tile"

    halo = 2 * P                                       # exact halo, no over-fetch
    # TODO(synk): jnp.pad(+cast) makes one extra HBM copy of x (see header).
    x_pad = jnp.pad(x, ((0, 0), (0, 0), (halo, halo))).astype(jnp.bfloat16)

    # Per-tap weight layout (K, C_out, C_*): static first-axis index per tap.
    w1f = jnp.transpose(w1, (2, 0, 1)).astype(jnp.bfloat16)      # (K, C_out, C_in)
    w2f = jnp.transpose(w2, (2, 0, 1)).astype(jnp.bfloat16)      # (K, C_out, C_out)
    b1c = b1.reshape(C_out, 1).astype(jnp.float32)
    if identity_res:
        bcc = b2.reshape(C_out, 1).astype(jnp.float32)
        extra_inputs = ()
    else:
        wpf = wp[:, :, 0].astype(jnp.bfloat16)                   # (C_out, C_in)
        bcc = (b2.astype(jnp.float32) + bp.astype(jnp.float32)).reshape(C_out, 1)
        extra_inputs = (wpf,)

    if n_lt == 1:
        # -------- auto-pipelined path: x block per sample, cross-sample prefetch
        kernel = _make_single_tile_kernel(L=L, P=P, K=K,
                                          identity_res=identity_res,
                                          out_dtype=out_dtype)
        grid = (N,)
        c2 = lambda n: (0, 0)
        c3 = lambda n: (0, 0, 0)
        in_specs = [
            pl.BlockSpec((1, C_in, L + 2 * halo), lambda n: (n, 0, 0)),  # x window
            pl.BlockSpec((K, C_out, C_in), c3),                          # w1 taps
            pl.BlockSpec((C_out, 1), c2),                                # b1
            pl.BlockSpec((K, C_out, C_out), c3),                         # w2 taps
            pl.BlockSpec((C_out, 1), c2),                                # b2 (+ bp)
        ]
        if not identity_res:
            in_specs.append(pl.BlockSpec((C_out, C_in), c2))             # proj
        out_specs = pl.BlockSpec((1, C_out, L), lambda n: (n, 0, 0))
        scratch = []
        dim_sem = ("parallel",)
    else:
        # -------- manual halo-DMA path: double-buffered x window per L tile
        kernel = _make_multi_tile_kernel(L=L, TL=TL, P=P, K=K,
                                         identity_res=identity_res,
                                         out_dtype=out_dtype)
        grid = (N, n_lt)
        c2 = lambda n, j: (0, 0)
        c3 = lambda n, j: (0, 0, 0)
        in_specs = [
            pl.BlockSpec(memory_space=pl.ANY),                           # x (HBM)
            pl.BlockSpec((K, C_out, C_in), c3),                          # w1 taps
            pl.BlockSpec((C_out, 1), c2),                                # b1
            pl.BlockSpec((K, C_out, C_out), c3),                         # w2 taps
            pl.BlockSpec((C_out, 1), c2),                                # b2 (+ bp)
        ]
        if not identity_res:
            in_specs.append(pl.BlockSpec((C_out, C_in), c2))             # proj
        out_specs = pl.BlockSpec((1, C_out, TL), lambda n, j: (n, 0, j))
        scratch = [pltpu.VMEM((2, C_in, TL + 4 * P), jnp.bfloat16),      # x window x2
                   pltpu.SemaphoreType.DMA((2,))]
        dim_sem = ("parallel", "arbitrary")

    inputs = (x_pad, w1f, b1c, w2f, bcc) + extra_inputs
    return pl.pallas_call(
        kernel,
        out_shape=jax.ShapeDtypeStruct((N, C_out, L), out_dtype),
        grid_spec=pltpu.PrefetchScalarGridSpec(
            num_scalar_prefetch=0, grid=grid,
            in_specs=in_specs, out_specs=out_specs, scratch_shapes=scratch),
        compiler_params=pltpu.CompilerParams(
            dimension_semantics=dim_sem,
            vmem_limit_bytes=vmem_limit),
    )(*inputs)


# ----------------------------------------------------------------------------
# Parameter setup (deterministic) + spectral normalization (plain JAX glue)
# ----------------------------------------------------------------------------
def spectral_normalize(w, key, n_iter=1, eps=1e-12):
    """Mirror torch.nn.utils.spectral_norm: w / sigma, sigma from power iter."""
    w_mat = w.reshape(w.shape[0], -1)
    u = jax.random.normal(key, (w.shape[0],), dtype=jnp.float32)
    u = u / (jnp.linalg.norm(u) + eps)
    v = None
    for _ in range(n_iter):
        v = w_mat.T @ u
        v = v / (jnp.linalg.norm(v) + eps)
        u = w_mat @ v
        u = u / (jnp.linalg.norm(u) + eps)
    sigma = u @ (w_mat @ v)
    return w / sigma


def init_conv1d(key, c_out, c_in, k):
    """PyTorch Conv1d default init: U(-b, b), b = 1/sqrt(c_in*k)."""
    kw, kb = jax.random.split(key)
    bound = 1.0 / jnp.sqrt(c_in * k)
    w = jax.random.uniform(kw, (c_out, c_in, k), jnp.float32, -bound, bound)
    b = jax.random.uniform(kb, (c_out,), jnp.float32, -bound, bound)
    return w, b


# ----------------------------------------------------------------------------
# Plain-JAX reference (f32) for sanity checking
# ----------------------------------------------------------------------------
def resblock_reference(x, w1, b1, w2, b2, wp, bp, *, padding):
    def conv1d(inp, w, b, pad):
        out = lax.conv_general_dilated(
            inp, w, window_strides=(1,), padding=[(pad, pad)],
            dimension_numbers=("NCH", "OIH", "NCH"))
        return out + b[None, :, None]

    def act(v):
        return jnp.where(v > 0, v, NEG_SLOPE * v)

    y = act(conv1d(x, w1, b1, padding))
    y = conv1d(y, w2, b2, padding)
    y0 = conv1d(x, wp, bp, 0) if wp is not None else x
    return act(y0 + y)


# ----------------------------------------------------------------------------
if __name__ == "__main__":
    root = jax.random.PRNGKey(0)

    def run_case(name, N, C_in, C_out, L, K, seq_tile, salt):
        P = (K - 1) // 2
        base = jax.random.fold_in(root, salt)
        kx, k1, k2, kp, s1, s2, sp = jax.random.split(base, 7)
        x = jax.random.normal(kx, (N, C_in, L), jnp.float32)

        w1_raw, b1 = init_conv1d(k1, C_out, C_in, K)
        w2_raw, b2 = init_conv1d(k2, C_out, C_out, K)
        w1 = spectral_normalize(w1_raw, s1)
        w2 = spectral_normalize(w2_raw, s2)
        if C_in != C_out:                      # projection branch active
            wp_raw, bp = init_conv1d(kp, C_out, C_in, 1)
            wp = spectral_normalize(wp_raw, sp)
        else:                                  # identity residual
            wp, bp = None, None

        out = resblock_forward(x, w1, b1, w2, b2, wp, bp,
                               kernel_size=K, stride=1, padding=P,
                               seq_tile=seq_tile)
        out = jax.block_until_ready(out)

        ref = resblock_reference(x, w1, b1, w2, b2, wp, bp, padding=P)
        assert out.shape == (N, C_out, L), (name, out.shape)
        outf = out.astype(jnp.float32)
        err = float(jnp.max(jnp.abs(outf - ref)))
        assert bool(jnp.allclose(outf, ref, atol=4e-2, rtol=4e-2)), (name, err)

    # Primary config: projection branch active, single L tile (auto-pipelined path).
    run_case("proj", N=2, C_in=16, C_out=32, L=128, K=3, seq_tile=2048, salt=0)
    # Multi-tile sequence path (halo DMA + prefetch) with identity residual fast path.
    run_case("tiled", N=2, C_in=16, C_out=16, L=256, K=5, seq_tile=128, salt=1)

    print("KERNEL_OK")
</pallas_src>

<mosaic_0001>
module attributes {stable_mosaic.version = 11 : i64} {
  func.func @kernel(%arg0: i32, %arg1: memref<1x16x132xbf16, #tpu.memory_space<vmem>>, %arg2: memref<3x32x16xbf16, #tpu.memory_space<vmem>>, %arg3: memref<32x1xf32, #tpu.memory_space<vmem>>, %arg4: memref<3x32x32xbf16, #tpu.memory_space<vmem>>, %arg5: memref<32x1xf32, #tpu.memory_space<vmem>>, %arg6: memref<32x16xbf16, #tpu.memory_space<vmem>>, %arg7: memref<1x32x128xbf16, #tpu.memory_space<vmem>>) attributes {dimension_semantics = [#tpu.dimension_semantics<parallel>], iteration_bounds = array<i64: 2>, scalar_prefetch = 0 : i64, scratch_operands = 0 : i64, tpu.core_type = #tpu.core_type<tc>, window_params = [{transform_indices = @transform_0, window_bounds = array<i64: 1, 16, 132>}, {pipeline_mode = #tpu.pipeline_mode<synchronous>, transform_indices = @transform_1, window_bounds = array<i64: 3, 32, 16>}, {pipeline_mode = #tpu.pipeline_mode<synchronous>, transform_indices = @transform_2, window_bounds = array<i64: 32, 1>}, {pipeline_mode = #tpu.pipeline_mode<synchronous>, transform_indices = @transform_3, window_bounds = array<i64: 3, 32, 32>}, {pipeline_mode = #tpu.pipeline_mode<synchronous>, transform_indices = @transform_4, window_bounds = array<i64: 32, 1>}, {pipeline_mode = #tpu.pipeline_mode<synchronous>, transform_indices = @transform_5, window_bounds = array<i64: 32, 16>}, {transform_indices = @transform_6, window_bounds = array<i64: 1, 32, 128>}]} {
    %c0 = arith.constant 0 : index
    %c0_0 = arith.constant 0 : index
    %c0_1 = arith.constant 0 : index
    %0 = vector.load %arg2[%c0, %c0_0, %c0_1] : memref<3x32x16xbf16, #tpu.memory_space<vmem>>, vector<1x32x16xbf16>
    %1 = vector.shape_cast %0 : vector<1x32x16xbf16> to vector<32x16xbf16>
    %c0_2 = arith.constant 0 : index
    %c0_3 = arith.constant 0 : index
    %c0_4 = arith.constant 0 : index
    %2 = vector.load %arg1[%c0_2, %c0_3, %c0_4] : memref<1x16x132xbf16, #tpu.memory_space<vmem>>, vector<1x16x130xbf16>
    %3 = vector.shape_cast %2 : vector<1x16x130xbf16> to vector<16x130xbf16>
    %cst = arith.constant dense<0.000000e+00> : vector<32x130xf32>
    %4 = tpu.matmul %1, %3, %cst {dimension_numbers = #tpu.dot_dimension_numbers<[1], [0], [0], [1], [0, 0, 1, 1], [], []>} : vector<32x16xbf16>, vector<16x130xbf16>, vector<32x130xf32> -> vector<32x130xf32>
    %c1 = arith.constant 1 : index
    %c0_5 = arith.constant 0 : index
    %c0_6 = arith.constant 0 : index
    %5 = vector.load %arg2[%c1, %c0_5, %c0_6] : memref<3x32x16xbf16, #tpu.memory_space<vmem>>, vector<1x32x16xbf16>
    %6 = vector.shape_cast %5 : vector<1x32x16xbf16> to vector<32x16xbf16>
    %c0_7 = arith.constant 0 : index
    %c0_8 = arith.constant 0 : index
    %c1_9 = arith.constant 1 : index
    %7 = vector.load %arg1[%c0_7, %c0_8, %c1_9] : memref<1x16x132xbf16, #tpu.memory_space<vmem>>, vector<1x16x130xbf16>
    %8 = vector.shape_cast %7 : vector<1x16x130xbf16> to vector<16x130xbf16>
    %cst_10 = arith.constant dense<0.000000e+00> : vector<32x130xf32>
    %9 = tpu.matmul %6, %8, %cst_10 {dimension_numbers = #tpu.dot_dimension_numbers<[1], [0], [0], [1], [0, 0, 1, 1], [], []>} : vector<32x16xbf16>, vector<16x130xbf16>, vector<32x130xf32> -> vector<32x130xf32>
    %10 = arith.addf %4, %9 : vector<32x130xf32>
    %c2 = arith.constant 2 : index
    %c0_11 = arith.constant 0 : index
    %c0_12 = arith.constant 0 : index
    %11 = vector.load %arg2[%c2, %c0_11, %c0_12] : memref<3x32x16xbf16, #tpu.memory_space<vmem>>, vector<1x32x16xbf16>
    %12 = vector.shape_cast %11 : vector<1x32x16xbf16> to vector<32x16xbf16>
    %c0_13 = arith.constant 0 : index
    %c0_14 = arith.constant 0 : index
    %c2_15 = arith.constant 2 : index
    %13 = vector.load %arg1[%c0_13, %c0_14, %c2_15] : memref<1x16x132xbf16, #tpu.memory_space<vmem>>, vector<1x16x130xbf16>
    %14 = vector.shape_cast %13 : vector<1x16x130xbf16> to vector<16x130xbf16>
    %cst_16 = arith.constant dense<0.000000e+00> : vector<32x130xf32>
    %15 = tpu.matmul %12, %14, %cst_16 {dimension_numbers = #tpu.dot_dimension_numbers<[1], [0], [0], [1], [0, 0, 1, 1], [], []>} : vector<32x16xbf16>, vector<16x130xbf16>, vector<32x130xf32> -> vector<32x130xf32>
    %16 = arith.addf %10, %15 : vector<32x130xf32>
    %c0_17 = arith.constant 0 : index
    %c0_18 = arith.constant 0 : index
    %17 = vector.load %arg3[%c0_17, %c0_18] : memref<32x1xf32, #tpu.memory_space<vmem>>, vector<32x1xf32>
    %18 = vector.broadcast %17 : vector<32x1xf32> to vector<32x130xf32>
    %19 = arith.addf %16, %18 : vector<32x130xf32>
    %cst_19 = arith.constant 2.000000e-01 : f32
    %20 = vector.broadcast %cst_19 : f32 to vector<32x130xf32>
    %21 = arith.mulf %20, %19 : vector<32x130xf32>
    %22 = arith.maximumf %19, %21 : vector<32x130xf32>
    %23 = arith.truncf %22 : vector<32x130xf32> to vector<32x130xbf16>
    %24 = tpu.iota {dimensions = array<i32: 1>} : vector<1x130xi32>
    %c-1_i32 = arith.constant -1 : i32
    %25 = vector.broadcast %c-1_i32 : i32 to vector<1x130xi32>
    %26 = arith.addi %25, %24 : vector<1x130xi32>
    %c0_i32 = arith.constant 0 : i32
    %27 = vector.broadcast %c0_i32 : i32 to vector<1x130xi32>
    %28 = arith.cmpi sge, %26, %27 : vector<1x130xi32>
    %c128_i32 = arith.constant 128 : i32
    %29 = vector.broadcast %c128_i32 : i32 to vector<1x130xi32>
    %30 = arith.cmpi slt, %26, %29 : vector<1x130xi32>
    %31 = arith.andi %28, %30 : vector<1x130xi1>
    %cst_20 = arith.constant 0.000000e+00 : bf16
    %32 = vector.broadcast %cst_20 : bf16 to vector<32x130xbf16>
    %33 = vector.shape_cast %31 : vector<1x130xi1> to vector<1x130xi1>
    %34 = vector.broadcast %33 : vector<1x130xi1> to vector<32x130xi1>
    %35 = arith.select %34, %23, %32 : vector<32x130xi1>, vector<32x130xbf16>
    %c0_21 = arith.constant 0 : index
    %c0_22 = arith.constant 0 : index
    %c0_23 = arith.constant 0 : index
    %36 = vector.load %arg4[%c0_21, %c0_22, %c0_23] : memref<3x32x32xbf16, #tpu.memory_space<vmem>>, vector<1x32x32xbf16>
    %37 = vector.shape_cast %36 : vector<1x32x32xbf16> to vector<32x32xbf16>
    %38 = vector.extract_strided_slice %35 {offsets = [0, 0], sizes = [32, 128], strides = [1, 1]} : vector<32x130xbf16> to vector<32x128xbf16>
    %cst_24 = arith.constant dense<0.000000e+00> : vector<32x128xf32>
    %39 = tpu.matmul %37, %38, %cst_24 {dimension_numbers = #tpu.dot_dimension_numbers<[1], [0], [0], [1], [0, 0, 1, 1], [], []>} : vector<32x32xbf16>, vector<32x128xbf16>, vector<32x128xf32> -> vector<32x128xf32>
    %c1_25 = arith.constant 1 : index
    %c0_26 = arith.constant 0 : index
    %c0_27 = arith.constant 0 : index
    %40 = vector.load %arg4[%c1_25, %c0_26, %c0_27] : memref<3x32x32xbf16, #tpu.memory_space<vmem>>, vector<1x32x32xbf16>
    %41 = vector.shape_cast %40 : vector<1x32x32xbf16> to vector<32x32xbf16>
    %42 = vector.extract_strided_slice %35 {offsets = [0, 1], sizes = [32, 128], strides = [1, 1]} : vector<32x130xbf16> to vector<32x128xbf16>
    %cst_28 = arith.constant dense<0.000000e+00> : vector<32x128xf32>
    %43 = tpu.matmul %41, %42, %cst_28 {dimension_numbers = #tpu.dot_dimension_numbers<[1], [0], [0], [1], [0, 0, 1, 1], [], []>} : vector<32x32xbf16>, vector<32x128xbf16>, vector<32x128xf32> -> vector<32x128xf32>
    %44 = arith.addf %39, %43 : vector<32x128xf32>
    %c2_29 = arith.constant 2 : index
    %c0_30 = arith.constant 0 : index
    %c0_31 = arith.constant 0 : index
    %45 = vector.load %arg4[%c2_29, %c0_30, %c0_31] : memref<3x32x32xbf16, #tpu.memory_space<vmem>>, vector<1x32x32xbf16>
    %46 = vector.shape_cast %45 : vector<1x32x32xbf16> to vector<32x32xbf16>
    %47 = vector.extract_strided_slice %35 {offsets = [0, 2], sizes = [32, 128], strides = [1, 1]} : vector<32x130xbf16> to vector<32x128xbf16>
    %cst_32 = arith.constant dense<0.000000e+00> : vector<32x128xf32>
    %48 = tpu.matmul %46, %47, %cst_32 {dimension_numbers = #tpu.dot_dimension_numbers<[1], [0], [0], [1], [0, 0, 1, 1], [], []>} : vector<32x32xbf16>, vector<32x128xbf16>, vector<32x128xf32> -> vector<32x128xf32>
    %49 = arith.addf %44, %48 : vector<32x128xf32>
    %c0_33 = arith.constant 0 : index
    %c0_34 = arith.constant 0 : index
    %c2_35 = arith.constant 2 : index
    %50 = vector.load %arg1[%c0_33, %c0_34, %c2_35] : memref<1x16x132xbf16, #tpu.memory_space<vmem>>, vector<1x16x128xbf16>
    %51 = vector.shape_cast %50 : vector<1x16x128xbf16> to vector<16x128xbf16>
    %c0_36 = arith.constant 0 : index
    %c0_37 = arith.constant 0 : index
    %52 = vector.load %arg6[%c0_36, %c0_37] : memref<32x16xbf16, #tpu.memory_space<vmem>>, vector<32x16xbf16>
    %cst_38 = arith.constant dense<0.000000e+00> : vector<32x128xf32>
    %53 = tpu.matmul %52, %51, %cst_38 {dimension_numbers = #tpu.dot_dimension_numbers<[1], [0], [0], [1], [0, 0, 1, 1], [], []>} : vector<32x16xbf16>, vector<16x128xbf16>, vector<32x128xf32> -> vector<32x128xf32>
    %54 = arith.addf %49, %53 : vector<32x128xf32>
    %c0_39 = arith.constant 0 : index
    %c0_40 = arith.constant 0 : index
    %55 = vector.load %arg5[%c0_39, %c0_40] : memref<32x1xf32, #tpu.memory_space<vmem>>, vector<32x1xf32>
    %56 = vector.broadcast %55 : vector<32x1xf32> to vector<32x128xf32>
    %57 = arith.addf %54, %56 : vector<32x128xf32>
    %cst_41 = arith.constant 2.000000e-01 : f32
    %58 = vector.broadcast %cst_41 : f32 to vector<32x128xf32>
    %59 = arith.mulf %58, %57 : vector<32x128xf32>
    %60 = arith.maximumf %57, %59 : vector<32x128xf32>
    %61 = arith.truncf %60 : vector<32x128xf32> to vector<32x128xbf16>
    %c0_42 = arith.constant 0 : index
    %c0_43 = arith.constant 0 : index
    %c0_44 = arith.constant 0 : index
    %62 = vector.load %arg7[%c0_42, %c0_43, %c0_44] : memref<1x32x128xbf16, #tpu.memory_space<vmem>>, vector<1x32x128xbf16>
    %63 = vector.shape_cast %62 : vector<1x32x128xbf16> to vector<32x128xbf16>
    %64 = vector.shape_cast %61 : vector<32x128xbf16> to vector<1x32x128xbf16>
    tpu.vector_store %arg7[%c0_42, %c0_43, %c0_44], %64 {strides = array<i32>} : memref<1x32x128xbf16, #tpu.memory_space<vmem>>, vector<1x32x128xbf16>,
    return
  }
  func.func @transform_0(%arg0: i32) -> (i32, i32, i32) {
    %c0_i32 = arith.constant 0 : i32
    %c0_i32_0 = arith.constant 0 : i32
    %c0_i32_1 = arith.constant 0 : i32
    return %arg0, %c0_i32, %c0_i32_0 : i32, i32, i32
  }
  func.func @transform_1(%arg0: i32) -> (i32, i32, i32) {
    %c0_i32 = arith.constant 0 : i32
    %c0_i32_0 = arith.constant 0 : i32
    %c0_i32_1 = arith.constant 0 : i32
    %c0_i32_2 = arith.constant 0 : i32
    return %c0_i32, %c0_i32_0, %c0_i32_1 : i32, i32, i32
  }
  func.func @transform_2(%arg0: i32) -> (i32, i32) {
    %c0_i32 = arith.constant 0 : i32
    %c0_i32_0 = arith.constant 0 : i32
    %c0_i32_1 = arith.constant 0 : i32
    return %c0_i32, %c0_i32_0 : i32, i32
  }
  func.func @transform_3(%arg0: i32) -> (i32, i32, i32) {
    %c0_i32 = arith.constant 0 : i32
    %c0_i32_0 = arith.constant 0 : i32
    %c0_i32_1 = arith.constant 0 : i32
    %c0_i32_2 = arith.constant 0 : i32
    return %c0_i32, %c0_i32_0, %c0_i32_1 : i32, i32, i32
  }
  func.func @transform_4(%arg0: i32) -> (i32, i32) {
    %c0_i32 = arith.constant 0 : i32
    %c0_i32_0 = arith.constant 0 : i32
    %c0_i32_1 = arith.constant 0 : i32
    return %c0_i32, %c0_i32_0 : i32, i32
  }
  func.func @transform_5(%arg0: i32) -> (i32, i32) {
    %c0_i32 = arith.constant 0 : i32
    %c0_i32_0 = arith.constant 0 : i32
    %c0_i32_1 = arith.constant 0 : i32
    return %c0_i32, %c0_i32_0 : i32, i32
  }
  func.func @transform_6(%arg0: i32) -> (i32, i32, i32) {
    %c0_i32 = arith.constant 0 : i32
    %c0_i32_0 = arith.constant 0 : i32
    %c0_i32_1 = arith.constant 0 : i32
    return %arg0, %c0_i32, %c0_i32_0 : i32, i32, i32
  }
}

</mosaic_0001>

<llo_original>
// kernel: tpu_custom_call.1
$region0: #{tpu_custom_call.1}
  #allocation0 [shape = 'u32[]', space=smem, size = 0x4, offset = 0x4, fixed_abs, tag = 'smem constant byte address 0x4 - core index']
  #allocation1 [shape = 'u32[144,128]{1,0:T(1,128)}', space=vmem, size = 0x12000, scoped, tag = 'internal scratch']
  %s0 = inlined_call_operand.vmem [shape: bf16[2,16,132], index: 0, kind: input, shape index: {}]
  %s1 = inlined_call_operand.vmem [shape: bf16[3,32,16], index: 1, kind: input, shape index: {}]
  %s2 = inlined_call_operand.vmem [shape: f32[32,1], index: 2, kind: input, shape index: {}]
  %s3 = inlined_call_operand.vmem [shape: bf16[3,32,32], index: 3, kind: input, shape index: {}]
  %s4 = inlined_call_operand.vmem [shape: f32[32,1], index: 4, kind: input, shape index: {}]
  %s5 = inlined_call_operand.vmem [shape: bf16[32,16], index: 5, kind: input, shape index: {}]
  %s6 = inlined_call_operand.hbm [shape: bf16[2,32,128], index: 6, kind: output, shape index: {}]
  %s7 = sld [smem:[#allocation0]]
  $region57: #{tpu_custom_call.1} parent=0
    _
  %s9 = ssub.s32 1, %s7
  %s10 = scalar_select 0, %s9, %s7
  $region1: #{tpu_custom_call.1} parent=0
    #allocation2 [shape = 'u8[16384]{0}', space=vmem, size = 0x4000, scoped, tag = 'output window, operand 0']
    #allocation3 [shape = 's32[2]{0}', space=sflag, size = 0x8, scoped, tag = 'scoped memory for tpu_custom_call.1']
    %11 = vsyncpa [#allocation3], 0
    %s12 = scalar_lea.sflag [#allocation3], 1
    %13 = vsyncpa %s12, 0
    loop: start=0, step=1, limit=4
    $region2: #{tpu_custom_call.1} parent=1 // loop_pre_header
      _
    $region3: #{tpu_custom_call.1} parent=1 // loop_header
      %s15 = sphi 0, %s19
      %p16 = scmp.ge.s32.totalorder %s15, 4
      %s25 = sphi 0, %s27
      %s28 = sphi 0, %s25
      %s29 = sphi 0, %s28
      %s45 = sphi 0, %s29
      %s49 = sphi 0, %s49
      %s51 = sphi 0, %s49
      %s52 = sphi 0, %s51
      %s66 = sphi 0, %s52
      %s70 = sphi 0, %s70
      %s72 = sphi 0, %s70
      %s73 = sphi 0, %s72
      %s87 = sphi 0, %s73
      %s91 = sphi 0, %s91
      %s93 = sphi 0, %s91
      %s94 = sphi 0, %s93
      %s108 = sphi 0, %s94
      %s112 = sphi 0, %s112
      %s114 = sphi 0, %s112
      %s115 = sphi 0, %s114
      %s129 = sphi 0, %s115
      %s133 = sphi 0, %s133
      %s135 = sphi 0, %s133
      %s136 = sphi 0, %s135
      %s150 = sphi 0, %s136
      %s156 = sphi 0, %s158
      %s159 = sphi 0, %s156
      %s160 = sphi 0, %s159
      %s176 = sphi 0, %s160
    $region4: #{tpu_custom_call.1} parent=1 // loop_header_branch
      %18 = sbr.rel (%p16) target = $region8
    $region5: #{tpu_custom_call.1} parent=1 // loop_body
      %s20 = ssub.s32 %s15, 1
      %s21 = ssub.s32 %s15, 2
      %s22 = sadd.s32 %s15, 1
      %s23 = ssub.s32 %s15, %s22
      %p24 = scmp.eq.s32.totalorder %s23, 0
      %s26 = sadd.s32 %s25, 1
      %s27 = scalar_select %p24, %s25, %s26
      %p30 = pneg %p24
      %p31 = scmp.eq.s32.totalorder %s15, 1
      %p32 = por %p30, %p31
      %p33 = scmp.ne.s32.totalorder %s25, %s28
      %p34 = scmp.eq.s32.totalorder %s15, 0
      %p35 = por %p33, %p34
      %p36 = scmp.ne.s32.totalorder %s25, %s28
      %p37 = scmp.eq.s32.totalorder %s20, 1
      %p38 = por %p36, %p37
      %p39 = scmp.ne.s32.totalorder %s28, %s29
      %p40 = scmp.eq.s32.totalorder %s20, 0
      %p41 = por %p39, %p40
      %p42 = scmp.ne.s32.totalorder %s28, %s29
      %p43 = scmp.eq.s32.totalorder %s21, 1
      %p44 = por %p42, %p43
      %p46 = scmp.ne.s32.totalorder %s29, %s45
      %p47 = scmp.eq.s32.totalorder %s21, 0
      %p48 = por %p46, %p47
      %s50 = sadd.s32 %s49, 1
      %p53 = scmp.eq.s32.totalorder %s15, 1
      %p54 = scmp.ne.s32.totalorder %s49, %s51
      %p55 = scmp.eq.s32.totalorder %s15, 0
      %p56 = por %p54, %p55
      %p57 = scmp.ne.s32.totalorder %s49, %s51
      %p58 = scmp.eq.s32.totalorder %s20, 1
      %p59 = por %p57, %p58
      %p60 = scmp.ne.s32.totalorder %s51, %s52
      %p61 = scmp.eq.s32.totalorder %s20, 0
      %p62 = por %p60, %p61
      %p63 = scmp.ne.s32.totalorder %s51, %s52
      %p64 = scmp.eq.s32.totalorder %s21, 1
      %p65 = por %p63, %p64
      %p67 = scmp.ne.s32.totalorder %s52, %s66
      %p68 = scmp.eq.s32.totalorder %s21, 0
      %p69 = por %p67, %p68
      %s71 = sadd.s32 %s70, 1
      %p74 = scmp.eq.s32.totalorder %s15, 1
      %p75 = scmp.ne.s32.totalorder %s70, %s72
      %p76 = scmp.eq.s32.totalorder %s15, 0
      %p77 = por %p75, %p76
      %p78 = scmp.ne.s32.totalorder %s70, %s72
      %p79 = scmp.eq.s32.totalorder %s20, 1
      %p80 = por %p78, %p79
      %p81 = scmp.ne.s32.totalorder %s72, %s73
      %p82 = scmp.eq.s32.totalorder %s20, 0
      %p83 = por %p81, %p82
      %p84 = scmp.ne.s32.totalorder %s72, %s73
      %p85 = scmp.eq.s32.totalorder %s21, 1
      %p86 = por %p84, %p85
      %p88 = scmp.ne.s32.totalorder %s73, %s87
      %p89 = scmp.eq.s32.totalorder %s21, 0
      %p90 = por %p88, %p89
      %s92 = sadd.s32 %s91, 1
      %p95 = scmp.eq.s32.totalorder %s15, 1
      %p96 = scmp.ne.s32.totalorder %s91, %s93
      %p97 = scmp.eq.s32.totalorder %s15, 0
      %p98 = por %p96, %p97
      %p99 = scmp.ne.s32.totalorder %s91, %s93
      %p100 = scmp.eq.s32.totalorder %s20, 1
      %p101 = por %p99, %p100
      %p102 = scmp.ne.s32.totalorder %s93, %s94
      %p103 = scmp.eq.s32.totalorder %s20, 0
      %p104 = por %p102, %p103
      %p105 = scmp.ne.s32.totalorder %s93, %s94
      %p106 = scmp.eq.s32.totalorder %s21, 1
      %p107 = por %p105, %p106
      %p109 = scmp.ne.s32.totalorder %s94, %s108
      %p110 = scmp.eq.s32.totalorder %s21, 0
      %p111 = por %p109, %p110
      %s113 = sadd.s32 %s112, 1
      %p116 = scmp.eq.s32.totalorder %s15, 1
      %p117 = scmp.ne.s32.totalorder %s112, %s114
      %p118 = scmp.eq.s32.totalorder %s15, 0
      %p119 = por %p117, %p118
      %p120 = scmp.ne.s32.totalorder %s112, %s114
      %p121 = scmp.eq.s32.totalorder %s20, 1
      %p122 = por %p120, %p121
      %p123 = scmp.ne.s32.totalorder %s114, %s115
      %p124 = scmp.eq.s32.totalorder %s20, 0
      %p125 = por %p123, %p124
      %p126 = scmp.ne.s32.totalorder %s114, %s115
      %p127 = scmp.eq.s32.totalorder %s21, 1
      %p128 = por %p126, %p127
      %p130 = scmp.ne.s32.totalorder %s115, %s129
      %p131 = scmp.eq.s32.totalorder %s21, 0
      %p132 = por %p130, %p131
      %s134 = sadd.s32 %s133, 1
      %p137 = scmp.eq.s32.totalorder %s15, 1
      %p138 = scmp.ne.s32.totalorder %s133, %s135
      %p139 = scmp.eq.s32.totalorder %s15, 0
      %p140 = por %p138, %p139
      %p141 = scmp.ne.s32.totalorder %s133, %s135
      %p142 = scmp.eq.s32.totalorder %s20, 1
      %p143 = por %p141, %p142
      %p144 = scmp.ne.s32.totalorder %s135, %s136
      %p145 = scmp.eq.s32.totalorder %s20, 0
      %p146 = por %p144, %p145
      %p147 = scmp.ne.s32.totalorder %s135, %s136
      %p148 = scmp.eq.s32.totalorder %s21, 1
      %p149 = por %p147, %p148
      %p151 = scmp.ne.s32.totalorder %s136, %s150
      %p152 = scmp.eq.s32.totalorder %s21, 0
      %p153 = por %p151, %p152
      %s154 = ssub.s32 %s15, %s22
      %p155 = scmp.eq.s32.totalorder %s154, 0
      %s157 = sadd.s32 %s156, 1
      %s158 = scalar_select %p155, %s156, %s157
      %p161 = pneg %p155
      %p162 = scmp.eq.s32.totalorder %s15, 1
      %p163 = por %p161, %p162
      %p164 = scmp.ne.s32.totalorder %s156, %s159
      %p165 = scmp.eq.s32.totalorder %s15, 0
      %p166 = por %p164, %p165
      %p167 = scmp.ne.s32.totalorder %s156, %s159
      %p168 = scmp.eq.s32.totalorder %s20, 1
      %p169 = por %p167, %p168
      %p170 = scmp.ne.s32.totalorder %s159, %s160
      %p171 = scmp.eq.s32.totalorder %s20, 0
      %p172 = por %p170, %p171
      %p173 = scmp.ne.s32.totalorder %s159, %s160
      %p174 = scmp.eq.s32.totalorder %s21, 1
      %p175 = por %p173, %p174
      %p177 = scmp.ne.s32.totalorder %s160, %s176
      %p178 = scmp.eq.s32.totalorder %s21, 0
      %p179 = por %p177, %p178
      %p180 = scmp.le.s32.totalorder 1, %s15
      %p181 = scmp.lt.s32.totalorder %s15, 3
      %p182 = pnand %p180, %p181
      %p183 = pneg %p182
      // Predicated region
      $region9: #{tpu_custom_call.1} parent=5 // pred_check
        _
      $region10: #{tpu_custom_call.1} parent=5 // pred_check_branch
        %185 = sbr.rel (%p182) target = $region12
      $region11: #{tpu_custom_call.1} parent=5 // pred_region
        %s186 = ssub.s32 %s15, 1
        // Predicated region
        $region13: #{tpu_custom_call.1} parent=11 // pred_check
          %p187 = pneg %p62
        $region14: #{tpu_custom_call.1} parent=11 // pred_check_branch
          %189 = sbr.rel (%p187) target = $region16
        $region15: #{tpu_custom_call.1} parent=11 // pred_region
          _
        $region16: #{tpu_custom_call.1} parent=11 // pred_fallthru
          _
        // Predicated region
        $region17: #{tpu_custom_call.1} parent=11 // pred_check
          %p190 = pneg %p83
        $region18: #{tpu_custom_call.1} parent=11 // pred_check_branch
          %192 = sbr.rel (%p190) target = $region20
        $region19: #{tpu_custom_call.1} parent=11 // pred_region
          _
        $region20: #{tpu_custom_call.1} parent=11 // pred_fallthru
          _
        // Predicated region
        $region21: #{tpu_custom_call.1} parent=11 // pred_check
          %p193 = pneg %p104
        $region22: #{tpu_custom_call.1} parent=11 // pred_check_branch
          %195 = sbr.rel (%p193) target = $region24
        $region23: #{tpu_custom_call.1} parent=11 // pred_region
          _
        $region24: #{tpu_custom_call.1} parent=11 // pred_fallthru
          _
        // Predicated region
        $region25: #{tpu_custom_call.1} parent=11 // pred_check
          %p196 = pneg %p125
        $region26: #{tpu_custom_call.1} parent=11 // pred_check_branch
          %198 = sbr.rel (%p196) target = $region28
        $region27: #{tpu_custom_call.1} parent=11 // pred_region
          _
        $region28: #{tpu_custom_call.1} parent=11 // pred_fallthru
          _
        // Predicated region
        $region29: #{tpu_custom_call.1} parent=11 // pred_check
          %p199 = pneg %p146
        $region30: #{tpu_custom_call.1} parent=11 // pred_check_branch
          %201 = sbr.rel (%p199) target = $region32
        $region31: #{tpu_custom_call.1} parent=11 // pred_region
          _
        $region32: #{tpu_custom_call.1} parent=11 // pred_fallthru
          _
      $region12: #{tpu_custom_call.1} parent=5 // pred_fallthru
        _
      %p202 = scmp.lt.s32.totalorder %s15, 2
      // Predicated region
      $region33: #{tpu_custom_call.1} parent=5 // pred_check
        %p203 = pneg %p202
      $region34: #{tpu_custom_call.1} parent=5 // pred_check_branch
        %205 = sbr.rel (%p203) target = $region36
      $region35: #{tpu_custom_call.1} parent=5 // pred_region
        // Predicated region
        $region37: #{tpu_custom_call.1} parent=35 // pred_check
          %p206 = pneg %p35
        $region38: #{tpu_custom_call.1} parent=35 // pred_check_branch
          %208 = sbr.rel (%p206) target = $region40
        $region39: #{tpu_custom_call.1} parent=35 // pred_region
          %p209 = scmp.lt.s32.totalorder %s15, 1
          %s210 = scalar_select %p209, %s15, 1
          %s211 = smul.addr %s210, 4
          %s212 = smul.addr %s211, 4
          %s213 = scalar_lea.vmem %s0, %s212
        $region40: #{tpu_custom_call.1} parent=35 // pred_fallthru
          _
      $region36: #{tpu_custom_call.1} parent=5 // pred_fallthru
        _
      %p214 = scmp.le.s32.totalorder 1, %s15
      %p215 = scmp.lt.s32.totalorder %s15, 3
      %p216 = pnand %p214, %p215
      %p217 = pneg %p216
      // Predicated region
      $region41: #{tpu_custom_call.1} parent=5 // pred_check
        _
      $region42: #{tpu_custom_call.1} parent=5 // pred_check_branch
        %219 = sbr.rel (%p216) target = $region44
      $region43: #{tpu_custom_call.1} parent=5 // pred_region
        %s220 = ssub.s32 %s15, 1
        %p221 = scmp.lt.s32.totalorder %s20, 1
        %s222 = scalar_select %p221, %s20, 1
        %s223 = smul.addr %s222, 4
        %s224 = smul.addr %s223, 4
        %s225 = scalar_lea.vmem %s0, %s224
        %p226 = pneg %p41
        %p227 = pneg %p38
        %p228 = pneg %p62
        %p229 = pneg %p59
        %p230 = pneg %p83
        %p231 = pneg %p80
        %p232 = pneg %p104
        %p233 = pneg %p101
        %p234 = pneg %p125
        %p235 = pneg %p122
        %p236 = pneg %p146
        %p237 = pneg %p143
        %p238 = pneg %p172
        %p239 = pneg %p169
        %s240 = sand.u32 %s159, 1
        %s241 = scalar_lea.sflag [#allocation3], %s240
        %s242 = sand.u32 %s159, 1
        %s243 = smul.addr %s242, 16
        %s244 = scalar_lea.vmem [#allocation2], %s243
        %p245 = scmp.lt.s32.totalorder %s20, 1
        %s246 = scalar_select %p245, %s20, 1
        %s247 = smul.addr %s246, 4
        %s248 = smul.addr %s247, 4
        %s249 = scalar_lea.vmem %s0, %s248
        %v253 = vld [vmem:[%s1] sm:$0xf]
        %v254 = vld [vmem:[%s1 + $0x4] sm:$0xf]
        %v255 = vld [vmem:[%s1 + $0x8] sm:$0xf]
        %v256 = vld [vmem:[%s1 + $0xc] sm:$0xf]
        %v257 = vld [vmem:[%s249] sm:$0xff]
        %v258 = vld [vmem:[%s249 + $0x8] sm:$0xff]
        %s259 = scalar_lea.vmem %s1, 16
        %v260 = vld [vmem:[%s259] sm:$0xf]
        %v261 = vld [vmem:[%s259 + $0x4] sm:$0xf]
        %v262 = vld [vmem:[%s259 + $0x8] sm:$0xf]
        %v263 = vld [vmem:[%s259 + $0xc] sm:$0xf]
        %v268 = vunpack.c.l.b16 %v260
        %v269 = vunpack.c.l.b16 %v261
        %v270 = vunpack.c.l.b16 %v262
        %v271 = vunpack.c.l.b16 %v263
        %v272 = vpack.c.b16 %v269, %v268
        %v273 = vpack.c.b16 %v271, %v270
        %v276 = vunpack.c.l.b16 %v257
        %v277 = vunpack.c.h.b16 %v257
        %v278 = vunpack.c.l.b16 %v258
        %v279 = vunpack.c.h.b16 %v258
        %v280 = vpack.c.b16 %v278, %v276
        %v281 = vpack.c.b16 %v279, %v277
        %282 = vrot.lane.b32.xlu0 %v280, 127
        %v283 = vpop.permute.xlu0 %282
        %284 = vrot.lane.b32.xlu0 %v281, 127
        %v285 = vpop.permute.xlu0 %284
        %vm286 = vcmask 1039360
        %v287 = vsel %vm286, %v283, %v285
        %vm290 = vcmask 130048
        %v292 = vsel %vm290, %v272, 0
        %v295 = vsel %vm290, %v273, 0
        %297 = vmatprep.subr.bf16.mxu0 %v285
        %298 = vmatpush1.bf16.msra.mxu0 %v287
        %299 = vmatprep.subr.bf16.mxu0 0
        %300 = vmatpush1.bf16.msra.mxu0 0
        %301 = vmatprep.subr.bf16.mxu0 0
        %302 = vmatpush1.bf16.msra.mxu0 0
        %303 = vmatprep.subr.bf16.mxu0 0
        %304 = vmatpush1.bf16.msra.mxu0 0
        %305 = vmatprep.subr.bf16.mxu0 0
        %306 = vmatpush1.bf16.msra.mxu0 0
        %307 = vmatprep.subr.bf16.mxu0 0
        %308 = vmatpush1.bf16.msra.mxu0 0
        %309 = vmatprep.subr.bf16.mxu0 0
        %310 = vmatpush1.bf16.msra.mxu0 0
        %311 = vmatprep.subr.bf16.mxu0 0
        %312 = vmatpush1.bf16.msra.mxu0 0
        %313 = vmatprep.subr.bf16.mxu0 0
        %314 = vmatpush1.bf16.msra.mxu0 0
        %315 = vmatprep.subr.bf16.mxu0 0
        %316 = vmatpush1.bf16.msra.mxu0 0
        %317 = vmatprep.subr.bf16.mxu0 0
        %318 = vmatpush1.bf16.msra.mxu0 0
        %319 = vmatprep.subr.bf16.mxu0 0
        %320 = vmatpush1.bf16.msra.mxu0 0
        %321 = vmatprep.subr.bf16.mxu0 0
        %322 = vmatpush1.bf16.msra.mxu0 0
        %323 = vmatprep.subr.bf16.mxu0 0
        %324 = vmatpush1.bf16.msra.mxu0 0
        %325 = vmatprep.subr.bf16.mxu0 0
        %326 = vmatpush1.bf16.msra.mxu0 0
        %327 = vmatprep.subr.bf16.mxu0 0
        %328 = vmatpush1.bf16.msra.mxu0 0
        %329 = vmatprep.mubr.bf16.mxu0 0
        %330 = vmatmul.mubr.bf16.gmra.mrb[0].mxu0 %v292
        %v331 = vpop.f32.mrb[0].mxu0
        %v332 = vadd.f32 0.0, %v331
        %v333 = vpop.f32.mrb[0].mxu0
        %v334 = vadd.f32 0.0, %v333
        %v335 = vpop.f32.mrb[0].mxu0
        %v336 = vadd.f32 0.0, %v335
        %v337 = vpop.f32.mrb[0].mxu0
        %v338 = vadd.f32 0.0, %v337
        %339 = vmatprep.mubr.bf16.mxu0 0
        %340 = vmatmul.mubr.bf16.gmra.mrb[0].mxu0 %v295
        %v341 = vpop.f32.mrb[0].mxu0
        %v342 = vadd.f32 0.0, %v341
        %v343 = vpop.f32.mrb[0].mxu0
        %v344 = vadd.f32 0.0, %v343
        %v345 = vpop.f32.mrb[0].mxu0
        %v346 = vadd.f32 0.0, %v345
        %v347 = vpop.f32.mrb[0].mxu0
        %v348 = vadd.f32 0.0, %v347
        %349 = vdwg.mxu0
        %v354 = vunpack.c.l.b16 %v253
        %v355 = vunpack.c.l.b16 %v254
        %v356 = vunpack.c.l.b16 %v255
        %v357 = vunpack.c.l.b16 %v256
        %v358 = vpack.c.b16 %v355, %v354
        %v359 = vpack.c.b16 %v357, %v356
        %v363 = vsel %vm290, %v358, 0
        %v366 = vsel %vm290, %v359, 0
        %368 = vmatprep.subr.bf16.mxu0 %v281
        %369 = vmatpush1.bf16.msra.mxu0 %v280
        %370 = vmatprep.subr.bf16.mxu0 0
        %371 = vmatpush1.bf16.msra.mxu0 0
        %372 = vmatprep.subr.bf16.mxu0 0
        %373 = vmatpush1.bf16.msra.mxu0 0
        %374 = vmatprep.subr.bf16.mxu0 0
        %375 = vmatpush1.bf16.msra.mxu0 0
        %376 = vmatprep.subr.bf16.mxu0 0
        %377 = vmatpush1.bf16.msra.mxu0 0
        %378 = vmatprep.subr.bf16.mxu0 0
        %379 = vmatpush1.bf16.msra.mxu0 0
        %380 = vmatprep.subr.bf16.mxu0 0
        %381 = vmatpush1.bf16.msra.mxu0 0
        %382 = vmatprep.subr.bf16.mxu0 0
        %383 = vmatpush1.bf16.msra.mxu0 0
        %384 = vmatprep.subr.bf16.mxu0 0
        %385 = vmatpush1.bf16.msra.mxu0 0
        %386 = vmatprep.subr.bf16.mxu0 0
        %387 = vmatpush1.bf16.msra.mxu0 0
        %388 = vmatprep.subr.bf16.mxu0 0
        %389 = vmatpush1.bf16.msra.mxu0 0
        %390 = vmatprep.subr.bf16.mxu0 0
        %391 = vmatpush1.bf16.msra.mxu0 0
        %392 = vmatprep.subr.bf16.mxu0 0
        %393 = vmatpush1.bf16.msra.mxu0 0
        %394 = vmatprep.subr.bf16.mxu0 0
        %395 = vmatpush1.bf16.msra.mxu0 0
        %396 = vmatprep.subr.bf16.mxu0 0
        %397 = vmatpush1.bf16.msra.mxu0 0
        %398 = vmatprep.subr.bf16.mxu0 0
        %399 = vmatpush1.bf16.msra.mxu0 0
        %400 = vmatprep.mubr.bf16.mxu0 0
        %401 = vmatmul.mubr.bf16.gmra.mrb[0].mxu0 %v363
        %v402 = vpop.f32.mrb[0].mxu0
        %v403 = vadd.f32 %v332, %v402
        %v404 = vpop.f32.mrb[0].mxu0
        %v405 = vadd.f32 %v334, %v404
        %v406 = vpop.f32.mrb[0].mxu0
        %v407 = vadd.f32 %v336, %v406
        %v408 = vpop.f32.mrb[0].mxu0
        %v409 = vadd.f32 %v338, %v408
        %410 = vmatprep.mubr.bf16.mxu0 0
        %411 = vmatmul.mubr.bf16.gmra.mrb[0].mxu0 %v366
        %v412 = vpop.f32.mrb[0].mxu0
        %v413 = vadd.f32 %v342, %v412
        %v414 = vpop.f32.mrb[0].mxu0
        %v415 = vadd.f32 %v344, %v414
        %v416 = vpop.f32.mrb[0].mxu0
        %v417 = vadd.f32 %v346, %v416
        %v418 = vpop.f32.mrb[0].mxu0
        %v419 = vadd.f32 %v348, %v418
        %420 = vdwg.mxu0
        %s421 = scalar_lea.vmem %s1, 32
        %v422 = vld [vmem:[%s421] sm:$0xf]
        %v423 = vld [vmem:[%s421 + $0x4] sm:$0xf]
        %v424 = vld [vmem:[%s421 + $0x8] sm:$0xf]
        %v425 = vld [vmem:[%s421 + $0xc] sm:$0xf]
        %v430 = vunpack.c.l.b16 %v422
        %v431 = vunpack.c.l.b16 %v423
        %v432 = vunpack.c.l.b16 %v424
        %v433 = vunpack.c.l.b16 %v425
        %v434 = vpack.c.b16 %v431, %v430
        %v435 = vpack.c.b16 %v433, %v432
        %436 = vrot.lane.b32.xlu0 %v280, 126
        %v437 = vpop.permute.xlu0 %436
        %438 = vrot.lane.b32.xlu0 %v281, 126
        %v439 = vpop.permute.xlu0 %438
        %vm440 = vcmask 1031168
        %v441 = vsel %vm440, %v437, %v439
        %v445 = vsel %vm290, %v434, 0
        %v448 = vsel %vm290, %v435, 0
        %450 = vmatprep.subr.bf16.mxu0 %v439
        %451 = vmatpush1.bf16.msra.mxu0 %v441
        %452 = vmatprep.subr.bf16.mxu0 0
        %453 = vmatpush1.bf16.msra.mxu0 0
        %454 = vmatprep.subr.bf16.mxu0 0
        %455 = vmatpush1.bf16.msra.mxu0 0
        %456 = vmatprep.subr.bf16.mxu0 0
        %457 = vmatpush1.bf16.msra.mxu0 0
        %458 = vmatprep.subr.bf16.mxu0 0
        %459 = vmatpush1.bf16.msra.mxu0 0
        %460 = vmatprep.subr.bf16.mxu0 0
        %461 = vmatpush1.bf16.msra.mxu0 0
        %462 = vmatprep.subr.bf16.mxu0 0
        %463 = vmatpush1.bf16.msra.mxu0 0
        %464 = vmatprep.subr.bf16.mxu0 0
        %465 = vmatpush1.bf16.msra.mxu0 0
        %466 = vmatprep.subr.bf16.mxu0 0
        %467 = vmatpush1.bf16.msra.mxu0 0
        %468 = vmatprep.subr.bf16.mxu0 0
        %469 = vmatpush1.bf16.msra.mxu0 0
        %470 = vmatprep.subr.bf16.mxu0 0
        %471 = vmatpush1.bf16.msra.mxu0 0
        %472 = vmatprep.subr.bf16.mxu0 0
        %473 = vmatpush1.bf16.msra.mxu0 0
        %474 = vmatprep.subr.bf16.mxu0 0
        %475 = vmatpush1.bf16.msra.mxu0 0
        %476 = vmatprep.subr.bf16.mxu0 0
        %477 = vmatpush1.bf16.msra.mxu0 0
        %478 = vmatprep.subr.bf16.mxu0 0
        %479 = vmatpush1.bf16.msra.mxu0 0
        %480 = vmatprep.subr.bf16.mxu0 0
        %481 = vmatpush1.bf16.msra.mxu0 0
        %482 = vmatprep.mubr.bf16.mxu0 0
        %483 = vmatmul.mubr.bf16.gmra.mrb[0].mxu0 %v445
        %v484 = vpop.f32.mrb[0].mxu0
        %v485 = vadd.f32 0.0, %v484
        %v486 = vpop.f32.mrb[0].mxu0
        %v487 = vadd.f32 0.0, %v486
        %v488 = vpop.f32.mrb[0].mxu0
        %v489 = vadd.f32 0.0, %v488
        %v490 = vpop.f32.mrb[0].mxu0
        %v491 = vadd.f32 0.0, %v490
        %492 = vmatprep.mubr.bf16.mxu0 0
        %493 = vmatmul.mubr.bf16.gmra.mrb[0].mxu0 %v448
        %v494 = vpop.f32.mrb[0].mxu0
        %v495 = vadd.f32 0.0, %v494
        %v496 = vpop.f32.mrb[0].mxu0
        %v497 = vadd.f32 0.0, %v496
        %v498 = vpop.f32.mrb[0].mxu0
        %v499 = vadd.f32 0.0, %v498
        %v500 = vpop.f32.mrb[0].mxu0
        %v501 = vadd.f32 0.0, %v500
        %502 = vdwg.mxu0
        %v503 = vadd.f32 %v403, %v485
        %v504 = vadd.f32 %v405, %v487
        %v505 = vadd.f32 %v407, %v489
        %v506 = vadd.f32 %v409, %v491
        %v507 = vadd.f32 %v413, %v495
        %v508 = vadd.f32 %v415, %v497
        %v509 = vadd.f32 %v417, %v499
        %v510 = vadd.f32 %v419, %v501
        %v511 = vld [vmem:[%s2] sm:$0xff]
        %v512 = vld [vmem:[%s2 + $0x8] sm:$0xff]
        %v513 = vld [vmem:[%s2 + $0x10] sm:$0xff]
        %v514 = vld [vmem:[%s2 + $0x18] sm:$0xff]
        %516 = vset.pattern.permute.xlu0 0
        %517 = vperm.xlu0 %516, %v511
        %v518 = vpop.permute.xlu0 %517
        %521 = vset.pattern.permute.xlu0 0
        %522 = vperm.xlu0 %521, %v512
        %v523 = vpop.permute.xlu0 %522
        %526 = vset.pattern.permute.xlu0 0
        %527 = vperm.xlu0 %526, %v513
        %v528 = vpop.permute.xlu0 %527
        %531 = vset.pattern.permute.xlu0 0
        %532 = vperm.xlu0 %531, %v514
        %v533 = vpop.permute.xlu0 %532
        %v535 = vadd.f32 %v503, %v518
        %v536 = vadd.f32 %v504, %v518
        %v537 = vadd.f32 %v505, %v523
        %v538 = vadd.f32 %v506, %v523
        %v539 = vadd.f32 %v507, %v528
        %v540 = vadd.f32 %v508, %v528
        %v541 = vadd.f32 %v509, %v533
        %v542 = vadd.f32 %v510, %v533
        %v543 = vmul.f32 %v535, 0.2
        %v544 = vmul.f32 %v536, 0.2
        %v545 = vmul.f32 %v537, 0.2
        %v546 = vmul.f32 %v538, 0.2
        %v547 = vmul.f32 %v539, 0.2
        %v548 = vmul.f32 %v540, 0.2
        %v549 = vmul.f32 %v541, 0.2
        %v550 = vmul.f32 %v542, 0.2
        %v551 = vmax.f32 %v535, %v543
        %v552 = vmax.f32 %v536, %v544
        %v553 = vmax.f32 %v537, %v545
        %v554 = vmax.f32 %v538, %v546
        %v555 = vmax.f32 %v539, %v547
        %v556 = vmax.f32 %v540, %v548
        %v557 = vmax.f32 %v541, %v549
        %v558 = vmax.f32 %v542, %v550
        %v559 = vpack.c.bf16 %v553, %v551
        %v560 = vpack.c.bf16 %v554, %v552
        %v561 = vpack.c.bf16 %v557, %v555
        %v562 = vpack.c.bf16 %v558, %v556
        %v563 = vlaneseq
        %v564 = vand.u32 %v563, 127
        %v565 = vadd.s32 %v564, 128
        %v566 = vadd.s32 %v564, 4294967295
        %v567 = vadd.s32 %v565, 4294967295
        %vm568 = vcmp.ge.s32.totalorder %v566, 0
        %vm569 = vcmp.ge.s32.totalorder %v567, 0
        %vm570 = vcmp.lt.s32.totalorder %v566, 128
        %vm571 = vcmp.lt.s32.totalorder %v567, 128
        %vm572 = vmand %vm568, %vm570
        %vm573 = vmand %vm569, %vm571
        %v574 = vsel %vm572, 1, 0
        %v575 = vsel %vm573, 1, 0
        %vm576 = vcmp.eq.s32.totalorder %v574, 1
        %vm577 = vcmp.eq.s32.totalorder %v575, 1
        %vm578 = vmpackc.low %vm577, %vm576
        %v579 = vsel %vm578, 65537, 0
        %v580 = vlaneseq
        %v581 = vshrl.u32 %v580, 7
        %v582 = vsub.s32 0, %v581
        %v583 = vrot.slane %v579, %v582
        %v584 = vlaneseq
        %v585 = vshrl.u32 %v584, 7
        %v586 = vsub.s32 4, %v585
        %v587 = vrot.slane %v579, %v586
        %vm588 = vcmp.ne.s16.totalorder %v583, 0
        %vm589 = vcmp.ne.s16.totalorder %v587, 0
        %v590 = vsel %vm588, %v559, 0
        %v591 = vsel %vm589, %v560, 0
        %v592 = vsel %vm588, %v561, 0
        %v593 = vsel %vm589, %v562, 0
        %v594 = vld [vmem:[%s3] sm:$0xf]
        %v595 = vld [vmem:[%s3 + $0x4] sm:$0xf]
        %v596 = vld [vmem:[%s3 + $0x8] sm:$0xf]
        %v597 = vld [vmem:[%s3 + $0xc] sm:$0xf]
        %s598 = scalar_lea.vmem %s3, 16
        %v599 = vld [vmem:[%s598] sm:$0xf]
        %v600 = vld [vmem:[%s598 + $0x4] sm:$0xf]
        %v601 = vld [vmem:[%s598 + $0x8] sm:$0xf]
        %v602 = vld [vmem:[%s598 + $0xc] sm:$0xf]
        %v607 = vunpack.c.l.b16 %v599
        %v608 = vunpack.c.l.b16 %v600
        %v609 = vunpack.c.l.b16 %v601
        %v610 = vunpack.c.l.b16 %v602
        %v611 = vpack.c.b16 %v608, %v607
        %v612 = vpack.c.b16 %v610, %v609
        %617 = vrot.lane.b32.xlu0 %v590, 127
        %v618 = vpop.permute.xlu0 %617
        %619 = vrot.lane.b32.xlu0 %v591, 127
        %v620 = vpop.permute.xlu0 %619
        %621 = vrot.lane.b32.xlu0 %v592, 127
        %v622 = vpop.permute.xlu0 %621
        %623 = vrot.lane.b32.xlu0 %v593, 127
        %v624 = vpop.permute.xlu0 %623
        %v625 = vsel %vm286, %v618, %v620
        %v626 = vsel %vm286, %v622, %v624
        %vm629 = vcmask 261120
        %v631 = vsel %vm629, %v611, 0
        %v634 = vsel %vm629, %v612, 0
        %636 = vmatprep.subr.bf16.mxu0 0
        %637 = vmatpush1.bf16.msra.mxu0 %v625
        %638 = vmatprep.subr.bf16.mxu0 0
        %639 = vmatpush1.bf16.msra.mxu0 %v626
        %640 = vmatprep.subr.bf16.mxu0 0
        %641 = vmatpush1.bf16.msra.mxu0 0
        %642 = vmatprep.subr.bf16.mxu0 0
        %643 = vmatpush1.bf16.msra.mxu0 0
        %644 = vmatprep.subr.bf16.mxu0 0
        %645 = vmatpush1.bf16.msra.mxu0 0
        %646 = vmatprep.subr.bf16.mxu0 0
        %647 = vmatpush1.bf16.msra.mxu0 0
        %648 = vmatprep.subr.bf16.mxu0 0
        %649 = vmatpush1.bf16.msra.mxu0 0
        %650 = vmatprep.subr.bf16.mxu0 0
        %651 = vmatpush1.bf16.msra.mxu0 0
        %652 = vmatprep.subr.bf16.mxu0 0
        %653 = vmatpush1.bf16.msra.mxu0 0
        %654 = vmatprep.subr.bf16.mxu0 0
        %655 = vmatpush1.bf16.msra.mxu0 0
        %656 = vmatprep.subr.bf16.mxu0 0
        %657 = vmatpush1.bf16.msra.mxu0 0
        %658 = vmatprep.subr.bf16.mxu0 0
        %659 = vmatpush1.bf16.msra.mxu0 0
        %660 = vmatprep.subr.bf16.mxu0 0
        %661 = vmatpush1.bf16.msra.mxu0 0
        %662 = vmatprep.subr.bf16.mxu0 0
        %663 = vmatpush1.bf16.msra.mxu0 0
        %664 = vmatprep.subr.bf16.mxu0 0
        %665 = vmatpush1.bf16.msra.mxu0 0
        %666 = vmatprep.subr.bf16.mxu0 0
        %667 = vmatpush1.bf16.msra.mxu0 0
        %668 = vmatprep.mubr.bf16.mxu0 0
        %669 = vmatmul.mubr.bf16.gmra.mrb[0].mxu0 %v631
        %v670 = vpop.f32.mrb[0].mxu0
        %v671 = vadd.f32 0.0, %v670
        %v672 = vpop.f32.mrb[0].mxu0
        %v673 = vpop.f32.mrb[0].mxu0
        %v674 = vadd.f32 0.0, %v673
        %v675 = vpop.f32.mrb[0].mxu0
        %676 = vmatprep.mubr.bf16.mxu0 0
        %677 = vmatmul.mubr.bf16.gmra.mrb[0].mxu0 %v634
        %v678 = vpop.f32.mrb[0].mxu0
        %v679 = vadd.f32 0.0, %v678
        %v680 = vpop.f32.mrb[0].mxu0
        %v681 = vpop.f32.mrb[0].mxu0
        %v682 = vadd.f32 0.0, %v681
        %v683 = vpop.f32.mrb[0].mxu0
        %684 = vdwg.mxu0
        %v689 = vunpack.c.l.b16 %v594
        %v690 = vunpack.c.l.b16 %v595
        %v691 = vunpack.c.l.b16 %v596
        %v692 = vunpack.c.l.b16 %v597
        %v693 = vpack.c.b16 %v690, %v689
        %v694 = vpack.c.b16 %v692, %v691
        %v696 = vsel %vm629, %v693, 0
        %v699 = vsel %vm629, %v694, 0
        %701 = vmatprep.subr.bf16.mxu0 0
        %702 = vmatpush1.bf16.msra.mxu0 %v590
        %703 = vmatprep.subr.bf16.mxu0 0
        %704 = vmatpush1.bf16.msra.mxu0 %v592
        %705 = vmatprep.subr.bf16.mxu0 0
        %706 = vmatpush1.bf16.msra.mxu0 0
        %707 = vmatprep.subr.bf16.mxu0 0
        %708 = vmatpush1.bf16.msra.mxu0 0
        %709 = vmatprep.subr.bf16.mxu0 0
        %710 = vmatpush1.bf16.msra.mxu0 0
        %711 = vmatprep.subr.bf16.mxu0 0
        %712 = vmatpush1.bf16.msra.mxu0 0
        %713 = vmatprep.subr.bf16.mxu0 0
        %714 = vmatpush1.bf16.msra.mxu0 0
        %715 = vmatprep.subr.bf16.mxu0 0
        %716 = vmatpush1.bf16.msra.mxu0 0
        %717 = vmatprep.subr.bf16.mxu0 0
        %718 = vmatpush1.bf16.msra.mxu0 0
        %719 = vmatprep.subr.bf16.mxu0 0
        %720 = vmatpush1.bf16.msra.mxu0 0
        %721 = vmatprep.subr.bf16.mxu0 0
        %722 = vmatpush1.bf16.msra.mxu0 0
        %723 = vmatprep.subr.bf16.mxu0 0
        %724 = vmatpush1.bf16.msra.mxu0 0
        %725 = vmatprep.subr.bf16.mxu0 0
        %726 = vmatpush1.bf16.msra.mxu0 0
        %727 = vmatprep.subr.bf16.mxu0 0
        %728 = vmatpush1.bf16.msra.mxu0 0
        %729 = vmatprep.subr.bf16.mxu0 0
        %730 = vmatpush1.bf16.msra.mxu0 0
        %731 = vmatprep.subr.bf16.mxu0 0
        %732 = vmatpush1.bf16.msra.mxu0 0
        %733 = vmatprep.mubr.bf16.mxu0 0
        %734 = vmatmul.mubr.bf16.gmra.mrb[0].mxu0 %v696
        %v735 = vpop.f32.mrb[0].mxu0
        %v736 = vadd.f32 %v671, %v735
        %v737 = vpop.f32.mrb[0].mxu0
        %v738 = vpop.f32.mrb[0].mxu0
        %v739 = vadd.f32 %v674, %v738
        %v740 = vpop.f32.mrb[0].mxu0
        %741 = vmatprep.mubr.bf16.mxu0 0
        %742 = vmatmul.mubr.bf16.gmra.mrb[0].mxu0 %v699
        %v743 = vpop.f32.mrb[0].mxu0
        %v744 = vadd.f32 %v679, %v743
        %v745 = vpop.f32.mrb[0].mxu0
        %v746 = vpop.f32.mrb[0].mxu0
        %v747 = vadd.f32 %v682, %v746
        %v748 = vpop.f32.mrb[0].mxu0
        %749 = vdwg.mxu0
        %s750 = scalar_lea.vmem %s3, 32
        %v751 = vld [vmem:[%s750] sm:$0xf]
        %v752 = vld [vmem:[%s750 + $0x4] sm:$0xf]
        %v753 = vld [vmem:[%s750 + $0x8] sm:$0xf]
        %v754 = vld [vmem:[%s750 + $0xc] sm:$0xf]
        %v759 = vunpack.c.l.b16 %v751
        %v760 = vunpack.c.l.b16 %v752
        %v761 = vunpack.c.l.b16 %v753
        %v762 = vunpack.c.l.b16 %v754
        %v763 = vpack.c.b16 %v760, %v759
        %v764 = vpack.c.b16 %v762, %v761
        %765 = vrot.lane.b32.xlu0 %v590, 126
        %v766 = vpop.permute.xlu0 %765
        %767 = vrot.lane.b32.xlu0 %v591, 126
        %v768 = vpop.permute.xlu0 %767
        %769 = vrot.lane.b32.xlu0 %v592, 126
        %v770 = vpop.permute.xlu0 %769
        %771 = vrot.lane.b32.xlu0 %v593, 126
        %v772 = vpop.permute.xlu0 %771
        %v773 = vsel %vm440, %v766, %v768
        %v774 = vsel %vm440, %v770, %v772
        %v778 = vsel %vm629, %v763, 0
        %v781 = vsel %vm629, %v764, 0
        %783 = vmatprep.subr.bf16.mxu0 0
        %784 = vmatpush1.bf16.msra.mxu0 %v773
        %785 = vmatprep.subr.bf16.mxu0 0
        %786 = vmatpush1.bf16.msra.mxu0 %v774
        %787 = vmatprep.subr.bf16.mxu0 0
        %788 = vmatpush1.bf16.msra.mxu0 0
        %789 = vmatprep.subr.bf16.mxu0 0
        %790 = vmatpush1.bf16.msra.mxu0 0
        %791 = vmatprep.subr.bf16.mxu0 0
        %792 = vmatpush1.bf16.msra.mxu0 0
        %793 = vmatprep.subr.bf16.mxu0 0
        %794 = vmatpush1.bf16.msra.mxu0 0
        %795 = vmatprep.subr.bf16.mxu0 0
        %796 = vmatpush1.bf16.msra.mxu0 0
        %797 = vmatprep.subr.bf16.mxu0 0
        %798 = vmatpush1.bf16.msra.mxu0 0
        %799 = vmatprep.subr.bf16.mxu0 0
        %800 = vmatpush1.bf16.msra.mxu0 0
        %801 = vmatprep.subr.bf16.mxu0 0
        %802 = vmatpush1.bf16.msra.mxu0 0
        %803 = vmatprep.subr.bf16.mxu0 0
        %804 = vmatpush1.bf16.msra.mxu0 0
        %805 = vmatprep.subr.bf16.mxu0 0
        %806 = vmatpush1.bf16.msra.mxu0 0
        %807 = vmatprep.subr.bf16.mxu0 0
        %808 = vmatpush1.bf16.msra.mxu0 0
        %809 = vmatprep.subr.bf16.mxu0 0
        %810 = vmatpush1.bf16.msra.mxu0 0
        %811 = vmatprep.subr.bf16.mxu0 0
        %812 = vmatpush1.bf16.msra.mxu0 0
        %813 = vmatprep.subr.bf16.mxu0 0
        %814 = vmatpush1.bf16.msra.mxu0 0
        %815 = vmatprep.mubr.bf16.mxu0 0
        %816 = vmatmul.mubr.bf16.gmra.mrb[0].mxu0 %v778
        %v817 = vpop.f32.mrb[0].mxu0
        %v818 = vadd.f32 0.0, %v817
        %v819 = vpop.f32.mrb[0].mxu0
        %v820 = vpop.f32.mrb[0].mxu0
        %v821 = vadd.f32 0.0, %v820
        %v822 = vpop.f32.mrb[0].mxu0
        %823 = vmatprep.mubr.bf16.mxu0 0
        %824 = vmatmul.mubr.bf16.gmra.mrb[0].mxu0 %v781
        %v825 = vpop.f32.mrb[0].mxu0
        %v826 = vadd.f32 0.0, %v825
        %v827 = vpop.f32.mrb[0].mxu0
        %v828 = vpop.f32.mrb[0].mxu0
        %v829 = vadd.f32 0.0, %v828
        %v830 = vpop.f32.mrb[0].mxu0
        %831 = vdwg.mxu0
        %v832 = vadd.f32 %v736, %v818
        %v833 = vadd.f32 %v739, %v821
        %v834 = vadd.f32 %v744, %v826
        %v835 = vadd.f32 %v747, %v829
        %v836 = vld [vmem:[%s5] sm:$0xf]
        %v837 = vld [vmem:[%s5 + $0x4] sm:$0xf]
        %v838 = vld [vmem:[%s5 + $0x8] sm:$0xf]
        %v839 = vld [vmem:[%s5 + $0xc] sm:$0xf]
        %v844 = vunpack.c.l.b16 %v836
        %v845 = vunpack.c.l.b16 %v837
        %v846 = vunpack.c.l.b16 %v838
        %v847 = vunpack.c.l.b16 %v839
        %v848 = vpack.c.b16 %v845, %v844
        %v849 = vpack.c.b16 %v847, %v846
        %v851 = vsel %vm290, %v848, 0
        %v854 = vsel %vm290, %v849, 0
        %856 = vmatprep.subr.bf16.mxu0 0
        %857 = vmatpush1.bf16.msra.mxu0 %v441
        %858 = vmatprep.subr.bf16.mxu0 0
        %859 = vmatpush1.bf16.msra.mxu0 0
        %860 = vmatprep.subr.bf16.mxu0 0
        %861 = vmatpush1.bf16.msra.mxu0 0
        %862 = vmatprep.subr.bf16.mxu0 0
        %863 = vmatpush1.bf16.msra.mxu0 0
        %864 = vmatprep.subr.bf16.mxu0 0
        %865 = vmatpush1.bf16.msra.mxu0 0
        %866 = vmatprep.subr.bf16.mxu0 0
        %867 = vmatpush1.bf16.msra.mxu0 0
        %868 = vmatprep.subr.bf16.mxu0 0
        %869 = vmatpush1.bf16.msra.mxu0 0
        %870 = vmatprep.subr.bf16.mxu0 0
        %871 = vmatpush1.bf16.msra.mxu0 0
        %872 = vmatprep.subr.bf16.mxu0 0
        %873 = vmatpush1.bf16.msra.mxu0 0
        %874 = vmatprep.subr.bf16.mxu0 0
        %875 = vmatpush1.bf16.msra.mxu0 0
        %876 = vmatprep.subr.bf16.mxu0 0
        %877 = vmatpush1.bf16.msra.mxu0 0
        %878 = vmatprep.subr.bf16.mxu0 0
        %879 = vmatpush1.bf16.msra.mxu0 0
        %880 = vmatprep.subr.bf16.mxu0 0
        %881 = vmatpush1.bf16.msra.mxu0 0
        %882 = vmatprep.subr.bf16.mxu0 0
        %883 = vmatpush1.bf16.msra.mxu0 0
        %884 = vmatprep.subr.bf16.mxu0 0
        %885 = vmatpush1.bf16.msra.mxu0 0
        %886 = vmatprep.subr.bf16.mxu0 0
        %887 = vmatpush1.bf16.msra.mxu0 0
        %888 = vmatprep.mubr.bf16.mxu0 0
        %889 = vmatmul.mubr.bf16.gmra.mrb[0].mxu0 %v851
        %v890 = vpop.f32.mrb[0].mxu0
        %v891 = vadd.f32 0.0, %v890
        %v892 = vpop.f32.mrb[0].mxu0
        %v893 = vpop.f32.mrb[0].mxu0
        %v894 = vadd.f32 0.0, %v893
        %v895 = vpop.f32.mrb[0].mxu0
        %896 = vmatprep.mubr.bf16.mxu0 0
        %897 = vmatmul.mubr.bf16.gmra.mrb[0].mxu0 %v854
        %v898 = vpop.f32.mrb[0].mxu0
        %v899 = vadd.f32 0.0, %v898
        %v900 = vpop.f32.mrb[0].mxu0
        %v901 = vpop.f32.mrb[0].mxu0
        %v902 = vadd.f32 0.0, %v901
        %v903 = vpop.f32.mrb[0].mxu0
        %904 = vdwg.mxu0
        %v905 = vadd.f32 %v832, %v891
        %v906 = vadd.f32 %v833, %v894
        %v907 = vadd.f32 %v834, %v899
        %v908 = vadd.f32 %v835, %v902
        %v909 = vld [vmem:[%s4] sm:$0xff]
        %v910 = vld [vmem:[%s4 + $0x8] sm:$0xff]
        %v911 = vld [vmem:[%s4 + $0x10] sm:$0xff]
        %v912 = vld [vmem:[%s4 + $0x18] sm:$0xff]
        %914 = vset.pattern.permute.xlu0 0
        %915 = vperm.xlu0 %914, %v909
        %v916 = vpop.permute.xlu0 %915
        %919 = vset.pattern.permute.xlu0 0
        %920 = vperm.xlu0 %919, %v910
        %v921 = vpop.permute.xlu0 %920
        %924 = vset.pattern.permute.xlu0 0
        %925 = vperm.xlu0 %924, %v911
        %v926 = vpop.permute.xlu0 %925
        %929 = vset.pattern.permute.xlu0 0
        %930 = vperm.xlu0 %929, %v912
        %v931 = vpop.permute.xlu0 %930
        %v933 = vadd.f32 %v905, %v916
        %v934 = vadd.f32 %v906, %v921
        %v935 = vadd.f32 %v907, %v926
        %v936 = vadd.f32 %v908, %v931
        %v937 = vmul.f32 %v933, 0.2
        %v938 = vmul.f32 %v934, 0.2
        %v939 = vmul.f32 %v935, 0.2
        %v940 = vmul.f32 %v936, 0.2
        %v941 = vmax.f32 %v933, %v937
        %v942 = vmax.f32 %v934, %v938
        %v943 = vmax.f32 %v935, %v939
        %v944 = vmax.f32 %v936, %v940
        %v945 = vpack.c.bf16 %v942, %v941
        %v946 = vpack.c.bf16 %v944, %v943
        %v949 = vunpack.c.l.b16 %v945
        %v950 = vunpack.c.h.b16 %v945
        %v951 = vunpack.c.l.b16 %v946
        %v952 = vunpack.c.h.b16 %v946
        %v953 = vpack.c.b16 %v949, %v949
        %v954 = vpack.c.b16 %v950, %v950
        %v955 = vpack.c.b16 %v951, %v951
        %v956 = vpack.c.b16 %v952, %v952
        %961 = vst [vmem:[%s244] sm:$0xf] %v953
        %962 = vst [vmem:[%s244 + $0x4] sm:$0xf] %v954
        %963 = vst [vmem:[%s244 + $0x8] sm:$0xf] %v955
        %964 = vst [vmem:[%s244 + $0xc] sm:$0xf] %v956
        %s965 = sand.u32 %s159, 1
        %s966 = scalar_lea.sflag [#allocation3], %s965
        %s967 = sand.u32 %s159, 1
        %s968 = smul.addr %s967, 16
        %s969 = scalar_lea.vmem [#allocation2], %s968
        // Predicated region
        $region45: #{tpu_custom_call.1} parent=43 // pred_check
          %p970 = pneg %p169
        $region46: #{tpu_custom_call.1} parent=43 // pred_check_branch
          %972 = sbr.rel (%p970) target = $region48
        $region47: #{tpu_custom_call.1} parent=43 // pred_region
          %s974 = ssub.s32 256, 256
          %975 = vsyncadd %s966, %s974
          %s976 = smul.addr %s20, 4
          %s977 = smul.addr %s976, 64
          %s978 = scalar_lea.hbm %s6, %s977
          %s979 = sshll.u32 %s969, 4
          %s980 = int_to_ptr.vmem [resolvable:$true] %s979
          %985 = dma.vmem_to_hbm [thread:$0]  %s980, 256, %s978, %s966, 64, 64, 4
        $region48: #{tpu_custom_call.1} parent=43 // pred_fallthru
          _
      $region44: #{tpu_custom_call.1} parent=5 // pred_fallthru
        _
      %p986 = scmp.le.s32.totalorder 2, %s15
      // Predicated region
      $region49: #{tpu_custom_call.1} parent=5 // pred_check
        %p987 = pneg %p986
      $region50: #{tpu_custom_call.1} parent=5 // pred_check_branch
        %989 = sbr.rel (%p987) target = $region52
      $region51: #{tpu_custom_call.1} parent=5 // pred_region
        %s990 = ssub.s32 %s15, 2
        // Predicated region
        $region53: #{tpu_custom_call.1} parent=51 // pred_check
          %p991 = pneg %p175
        $region54: #{tpu_custom_call.1} parent=51 // pred_check_branch
          %993 = sbr.rel (%p991) target = $region56
        $region55: #{tpu_custom_call.1} parent=51 // pred_region
          %s994 = sand.u32 %s160, 1
          %s995 = scalar_lea.sflag [#allocation3], %s994
          %s996 = sand.u32 %s160, 1
          %s997 = smul.addr %s996, 16
          %s998 = scalar_lea.vmem [#allocation2], %s997
          %999 = dma.done %s995, 256
        $region56: #{tpu_custom_call.1} parent=51 // pred_fallthru
          _
      $region52: #{tpu_custom_call.1} parent=5 // pred_fallthru
        _
    $region6: #{tpu_custom_call.1} parent=1 // loop_footer
      %s19 = sadd.s32 1, %s15
    $region7: #{tpu_custom_call.1} parent=1 // loop_footer_branch
      %14 = sbr.rel target = $region3
    $region8: #{tpu_custom_call.1} parent=1 // loop_exit
      _
    %1000 = vsyncpa [#allocation3], 1
    %s1001 = scalar_lea.sflag [#allocation3], 1
    %1002 = vsyncpa %s1001, 1

</llo_original>
